<compile_context>
chip_gen: v7x
topology: tpu7x:2x2x1
jax: 0.10.0
libtpu: 0.0.40
codegen_flags: <defaults>
</compile_context>

<pallas_src>
import functools

import jax
import jax.numpy as jnp
from jax import lax
from jax.experimental import pallas as pl
from jax.experimental.pallas import tpu as pltpu

# Hyperparameters (globals in the original baseline/DCF/Boston/model.py)
N_HIDDEN1 = 64
N_HIDDEN2 = 32
N_OUT = 16

LANES = 128        # every packed block is 128 lanes wide (lane-dense)
ITEM_COL = 64      # lane offset of the item tower's hidden blocks (h1, h2)

# Packed-slab row offsets (all sections 128 lanes wide, stored bf16).
W1_OFF = 0
W2_OFF = W1_OFF + LANES
W3_OFF = W2_OFF + LANES
B_OFF = W3_OFF + LANES
SLAB_ROWS = B_OFF + 8


def _round_up(x, m):
    return (x + m - 1) // m * m


def _check_dims(user_dim, item_dim):
    assert user_dim + item_dim <= LANES, "fused packing needs user_dim+item_dim <= 128"
    assert N_HIDDEN1 <= ITEM_COL and ITEM_COL + N_HIDDEN1 <= LANES
    assert N_HIDDEN2 <= ITEM_COL and ITEM_COL + N_HIDDEN2 <= LANES
    assert N_OUT <= LANES


def pack_dcf_params(params, user_dim, item_dim):
    """Pack all 12 parameter tensors into ONE block-diagonal bf16 slab (built once).

    W1 (128,128): rows [0,user_dim) x cols [0,64)            = user w1
                  rows [user_dim,user_dim+item_dim) x [64,128)= item w1
    W2 (128,128): rows [0,64)  x cols [0,32)                  = user w2
                  rows [64,128) x cols [64,96)                = item w2
    W3 (128,128): rows [0,32)  x cols [0,16)                  = user w3
                  rows [64,96) x cols [0,16)                  = item w3   (shared output lanes)
    B  (8,128)  : row 0/1 = user/item b1, 2/3 = b2, 4/5 = b3 (each in its tower's lanes)
    """
    _check_dims(user_dim, item_dim)
    slab = jnp.zeros((SLAB_ROWS, LANES), jnp.float32)

    # W1
    slab = slab.at[W1_OFF:W1_OFF + user_dim, 0:N_HIDDEN1].set(params["uw1"])
    slab = slab.at[W1_OFF + user_dim:W1_OFF + user_dim + item_dim,
                   ITEM_COL:ITEM_COL + N_HIDDEN1].set(params["iw1"])
    # W2
    slab = slab.at[W2_OFF:W2_OFF + N_HIDDEN1, 0:N_HIDDEN2].set(params["uw2"])
    slab = slab.at[W2_OFF + ITEM_COL:W2_OFF + ITEM_COL + N_HIDDEN1,
                   ITEM_COL:ITEM_COL + N_HIDDEN2].set(params["iw2"])
    # W3 (both towers write the same output lanes [0, N_OUT))
    slab = slab.at[W3_OFF:W3_OFF + N_HIDDEN2, 0:N_OUT].set(params["uw3"])
    slab = slab.at[W3_OFF + ITEM_COL:W3_OFF + ITEM_COL + N_HIDDEN2,
                   0:N_OUT].set(params["iw3"])
    # Biases
    slab = slab.at[B_OFF + 0, 0:N_HIDDEN1].set(params["ub1"][0])
    slab = slab.at[B_OFF + 1, ITEM_COL:ITEM_COL + N_HIDDEN1].set(params["ib1"][0])
    slab = slab.at[B_OFF + 2, 0:N_HIDDEN2].set(params["ub2"][0])
    slab = slab.at[B_OFF + 3, ITEM_COL:ITEM_COL + N_HIDDEN2].set(params["ib2"][0])
    slab = slab.at[B_OFF + 4, 0:N_OUT].set(params["ub3"][0])
    slab = slab.at[B_OFF + 5, 0:N_OUT].set(params["ib3"][0])

    return slab.astype(jnp.bfloat16)


def dcf_kernel(u_ref, i_ref, p_ref, score_ref, x_ref, *,
               n_users, n_items, user_dim, item_dim, item_row_off):
    # --- assemble the block-diagonal combined input in a VMEM scratch ---------
    #   rows [0, n_users)                     : user features in lanes [0, user_dim)
    #   rows [item_row_off, item_row_off+ni)  : item features in lanes [user_dim, user_dim+item_dim)
    # All other rows/lanes are zero; extra item rows (lane-dense padding of the
    # score output) produce garbage embeddings that are sliced off in the wrapper.
    x_ref[...] = jnp.zeros_like(x_ref)
    x_ref[0:n_users, 0:user_dim] = u_ref[...]
    x_ref[item_row_off:item_row_off + n_items,
          user_dim:user_dim + item_dim] = i_ref[...]

    x = x_ref[...].astype(jnp.bfloat16)
    n_rows = x.shape[0]
    is_user = lax.broadcasted_iota(jnp.int32, (n_rows, 1), 0) < n_users

    # Weight sections (bf16, 128x128 each) and the 8-row bias block (upcast to f32).
    w1 = p_ref[W1_OFF:W1_OFF + LANES, :]
    w2 = p_ref[W2_OFF:W2_OFF + LANES, :]
    w3 = p_ref[W3_OFF:W3_OFF + LANES, :]
    b = p_ref[B_OFF:B_OFF + 8, :].astype(jnp.float32)

    def layer(h_bf16, w, b_user, b_item):
        # Row-selected bias keeps the two towers' lane blocks exactly separated
        # (no cross-tower bias leakage into the padded lanes).
        bias = jnp.where(is_user, b_user, b_item)
        acc = jnp.dot(h_bf16, w, preferred_element_type=jnp.float32) + bias
        return jnp.maximum(acc, 0.0)

    h1 = layer(x, w1, b[0:1, :], b[1:2, :])
    h2 = layer(h1.astype(jnp.bfloat16), w2, b[2:3, :], b[3:4, :])
    e = layer(h2.astype(jnp.bfloat16), w3, b[4:5, :], b[5:6, :])

    # Score = user_embed @ item_embed.T in NT form (contract lane axes of both),
    # so no explicit transpose of the item embeddings is materialized.
    # Output lane width is the padded (multiple-of-128) item count -> unmasked stores.
    user_e = e[0:n_users, :].astype(jnp.bfloat16)
    item_e = e[item_row_off:item_row_off + score_ref.shape[1], :].astype(jnp.bfloat16)
    score_ref[...] = lax.dot_general(
        user_e, item_e,
        dimension_numbers=(((1,), (1,)), ((), ())),
        preferred_element_type=jnp.float32)


def dcf_forward(user_matrix, item_matrix, packed_params):
    n_users, user_dim = user_matrix.shape
    n_items, item_dim = item_matrix.shape
    _check_dims(user_dim, item_dim)

    item_row_off = _round_up(n_users, 8)          # item rows start 8-aligned
    n_items_pad = _round_up(n_items, LANES)       # lane-dense score width
    x_rows = item_row_off + n_items_pad           # combined MLP batch (rows)

    kernel = functools.partial(
        dcf_kernel, n_users=n_users, n_items=n_items,
        user_dim=user_dim, item_dim=item_dim, item_row_off=item_row_off)

    flops = (2 * x_rows * LANES * LANES * 3            # fused 3-layer MLP chain
             + 2 * n_users * LANES * n_items_pad)      # score matmul
    bytes_accessed = (4 * user_matrix.size + 4 * item_matrix.size
                      + 2 * packed_params.size + 4 * n_users * n_items_pad)

    vmem = pl.BlockSpec(memory_space=pltpu.MemorySpace.VMEM)
    score_pad = pl.pallas_call(
        kernel,
        out_shape=jax.ShapeDtypeStruct((n_users, n_items_pad), jnp.float32),
        in_specs=[vmem, vmem, vmem],
        out_specs=vmem,
        scratch_shapes=[pltpu.VMEM((x_rows, LANES), jnp.float32)],
        cost_estimate=pl.CostEstimate(flops=flops, transcendentals=0,
                                      bytes_accessed=bytes_accessed),
    )(user_matrix, item_matrix, packed_params)
    return score_pad[:, :n_items]


def _linear_params(key, fan_in, fan_out):
    """PyTorch nn.Linear default init: U(-1/sqrt(fan_in), 1/sqrt(fan_in)).

    Weight stored transposed as (fan_in, fan_out); bias as (1, fan_out).
    """
    kw, kb = jax.random.split(key)
    bound = 1.0 / jnp.sqrt(jnp.float32(fan_in))
    w = jax.random.uniform(kw, (fan_in, fan_out), jnp.float32, -bound, bound)
    b = jax.random.uniform(kb, (1, fan_out), jnp.float32, -bound, bound)
    return w, b


def init_dcf_params(key, user_dim, item_dim):
    keys = jax.random.split(key, 6)
    uw1, ub1 = _linear_params(keys[0], user_dim, N_HIDDEN1)
    uw2, ub2 = _linear_params(keys[1], N_HIDDEN1, N_HIDDEN2)
    uw3, ub3 = _linear_params(keys[2], N_HIDDEN2, N_OUT)
    iw1, ib1 = _linear_params(keys[3], item_dim, N_HIDDEN1)
    iw2, ib2 = _linear_params(keys[4], N_HIDDEN1, N_HIDDEN2)
    iw3, ib3 = _linear_params(keys[5], N_HIDDEN2, N_OUT)
    return dict(uw1=uw1, ub1=ub1, uw2=uw2, ub2=ub2, uw3=uw3, ub3=ub3,
                iw1=iw1, ib1=ib1, iw2=iw2, ib2=ib2, iw3=iw3, ib3=ib3)


if __name__ == "__main__":
    key = jax.random.PRNGKey(0)
    k_u, k_i, k_p = jax.random.split(key, 3)

    n_users, user_dim = 16, 32
    n_items, item_dim = 12, 24

    user_matrix = jax.random.normal(k_u, (n_users, user_dim), jnp.float32)
    item_matrix = jax.random.normal(k_i, (n_items, item_dim), jnp.float32)
    params = init_dcf_params(k_p, user_dim, item_dim)
    packed = pack_dcf_params(params, user_dim, item_dim)   # built once at init

    score = dcf_forward(user_matrix, item_matrix, packed)
    jax.block_until_ready(score)

    # Pure-JAX reference mirroring the kernel's numerics exactly:
    # bf16 weights/biases/activation casts, f32 MXU accumulation.
    q = lambda a: a.astype(jnp.bfloat16)
    deq = lambda a: a.astype(jnp.bfloat16).astype(jnp.float32)

    def ref_tower(x, w1, b1, w2, b2, w3, b3):
        h1 = jnp.maximum(jnp.dot(q(x), q(w1), preferred_element_type=jnp.float32) + deq(b1), 0.0)
        h2 = jnp.maximum(jnp.dot(q(h1), q(w2), preferred_element_type=jnp.float32) + deq(b2), 0.0)
        return jnp.maximum(jnp.dot(q(h2), q(w3), preferred_element_type=jnp.float32) + deq(b3), 0.0)

    ue = ref_tower(user_matrix, params["uw1"], params["ub1"],
                   params["uw2"], params["ub2"], params["uw3"], params["ub3"])
    ie = ref_tower(item_matrix, params["iw1"], params["ib1"],
                   params["iw2"], params["ib2"], params["iw3"], params["ib3"])
    ref_score = jnp.dot(q(ue), q(ie).T, preferred_element_type=jnp.float32)

    assert score.shape == (n_users, n_items)
    max_err = float(jnp.max(jnp.abs(score - ref_score)))
    assert jnp.allclose(score, ref_score, atol=2e-2, rtol=2e-2), max_err

    print("KERNEL_OK")
</pallas_src>

<mosaic_0001>
module attributes {stable_mosaic.version = 11 : i64} {
  func.func @dcf_kernel(%arg0: memref<16x32xf32, #tpu.memory_space<vmem>>, %arg1: memref<12x24xf32, #tpu.memory_space<vmem>>, %arg2: memref<392x128xbf16, #tpu.memory_space<vmem>>, %arg3: memref<16x128xf32, #tpu.memory_space<vmem>>, %arg4: memref<144x128xf32, #tpu.memory_space<vmem>>) attributes {dimension_semantics = [], scalar_prefetch = 0 : i64, scratch_operands = 1 : i64, tpu.core_type = #tpu.core_type<tc>} {
    %cst = arith.constant 0.000000e+00 : f32
    %0 = vector.broadcast %cst : f32 to vector<144x128xf32>
    %c0 = arith.constant 0 : index
    %c0_0 = arith.constant 0 : index
    %1 = vector.load %arg4[%c0, %c0_0] : memref<144x128xf32, #tpu.memory_space<vmem>>, vector<144x128xf32>
    tpu.vector_store %arg4[%c0, %c0_0], %0 {strides = array<i32>} : memref<144x128xf32, #tpu.memory_space<vmem>>, vector<144x128xf32>,
    %c0_1 = arith.constant 0 : index
    %c0_2 = arith.constant 0 : index
    %2 = vector.load %arg0[%c0_1, %c0_2] : memref<16x32xf32, #tpu.memory_space<vmem>>, vector<16x32xf32>
    %c0_3 = arith.constant 0 : index
    %c0_4 = arith.constant 0 : index
    %3 = vector.load %arg4[%c0_3, %c0_4] : memref<144x128xf32, #tpu.memory_space<vmem>>, vector<16x32xf32>
    tpu.vector_store %arg4[%c0_3, %c0_4], %2 {strides = array<i32>} : memref<144x128xf32, #tpu.memory_space<vmem>>, vector<16x32xf32>,
    %c0_5 = arith.constant 0 : index
    %c0_6 = arith.constant 0 : index
    %4 = vector.load %arg1[%c0_5, %c0_6] : memref<12x24xf32, #tpu.memory_space<vmem>>, vector<12x24xf32>
    %c16 = arith.constant 16 : index
    %c32 = arith.constant 32 : index
    %5 = vector.load %arg4[%c16, %c32] : memref<144x128xf32, #tpu.memory_space<vmem>>, vector<12x24xf32>
    tpu.vector_store %arg4[%c16, %c32], %4 {strides = array<i32>} : memref<144x128xf32, #tpu.memory_space<vmem>>, vector<12x24xf32>,
    %c0_7 = arith.constant 0 : index
    %c0_8 = arith.constant 0 : index
    %6 = vector.load %arg4[%c0_7, %c0_8] : memref<144x128xf32, #tpu.memory_space<vmem>>, vector<144x128xf32>
    %7 = arith.truncf %6 : vector<144x128xf32> to vector<144x128xbf16>
    %8 = tpu.iota {dimensions = array<i32: 0>} : vector<144x1xi32>
    %c16_i32 = arith.constant 16 : i32
    %9 = vector.broadcast %c16_i32 : i32 to vector<144x1xi32>
    %10 = arith.cmpi slt, %8, %9 : vector<144x1xi32>
    %c0_9 = arith.constant 0 : index
    %c0_10 = arith.constant 0 : index
    %11 = vector.load %arg2[%c0_9, %c0_10] : memref<392x128xbf16, #tpu.memory_space<vmem>>, vector<128x128xbf16>
    %c128 = arith.constant 128 : index
    %c0_11 = arith.constant 0 : index
    %12 = vector.load %arg2[%c128, %c0_11] : memref<392x128xbf16, #tpu.memory_space<vmem>>, vector<128x128xbf16>
    %c256 = arith.constant 256 : index
    %c0_12 = arith.constant 0 : index
    %13 = vector.load %arg2[%c256, %c0_12] : memref<392x128xbf16, #tpu.memory_space<vmem>>, vector<128x128xbf16>
    %c384 = arith.constant 384 : index
    %c0_13 = arith.constant 0 : index
    %14 = vector.load %arg2[%c384, %c0_13] : memref<392x128xbf16, #tpu.memory_space<vmem>>, vector<8x128xbf16>
    %15 = arith.extf %14 : vector<8x128xbf16> to vector<8x128xf32>
    %16 = vector.extract_strided_slice %15 {offsets = [0, 0], sizes = [1, 128], strides = [1, 1]} : vector<8x128xf32> to vector<1x128xf32>
    %17 = vector.extract_strided_slice %15 {offsets = [1, 0], sizes = [1, 128], strides = [1, 1]} : vector<8x128xf32> to vector<1x128xf32>
    %18 = vector.shape_cast %10 : vector<144x1xi1> to vector<144x1xi1>
    %19 = vector.broadcast %18 : vector<144x1xi1> to vector<144x128xi1>
    %20 = vector.shape_cast %16 : vector<1x128xf32> to vector<1x128xf32>
    %21 = vector.broadcast %20 : vector<1x128xf32> to vector<144x128xf32>
    %22 = vector.shape_cast %17 : vector<1x128xf32> to vector<1x128xf32>
    %23 = vector.broadcast %22 : vector<1x128xf32> to vector<144x128xf32>
    %24 = arith.select %19, %21, %23 : vector<144x128xi1>, vector<144x128xf32>
    %cst_14 = arith.constant dense<0.000000e+00> : vector<144x128xf32>
    %25 = tpu.matmul %7, %11, %cst_14 {dimension_numbers = #tpu.dot_dimension_numbers<[1], [0], [0], [1], [0, 0, 1, 1], [], []>} : vector<144x128xbf16>, vector<128x128xbf16>, vector<144x128xf32> -> vector<144x128xf32>
    %26 = arith.addf %25, %24 : vector<144x128xf32>
    %cst_15 = arith.constant 0.000000e+00 : f32
    %27 = vector.broadcast %cst_15 : f32 to vector<144x128xf32>
    %28 = arith.maximumf %26, %27 : vector<144x128xf32>
    %29 = arith.truncf %28 : vector<144x128xf32> to vector<144x128xbf16>
    %30 = vector.extract_strided_slice %15 {offsets = [2, 0], sizes = [1, 128], strides = [1, 1]} : vector<8x128xf32> to vector<1x128xf32>
    %31 = vector.extract_strided_slice %15 {offsets = [3, 0], sizes = [1, 128], strides = [1, 1]} : vector<8x128xf32> to vector<1x128xf32>
    %32 = vector.shape_cast %10 : vector<144x1xi1> to vector<144x1xi1>
    %33 = vector.broadcast %32 : vector<144x1xi1> to vector<144x128xi1>
    %34 = vector.shape_cast %30 : vector<1x128xf32> to vector<1x128xf32>
    %35 = vector.broadcast %34 : vector<1x128xf32> to vector<144x128xf32>
    %36 = vector.shape_cast %31 : vector<1x128xf32> to vector<1x128xf32>
    %37 = vector.broadcast %36 : vector<1x128xf32> to vector<144x128xf32>
    %38 = arith.select %33, %35, %37 : vector<144x128xi1>, vector<144x128xf32>
    %cst_16 = arith.constant dense<0.000000e+00> : vector<144x128xf32>
    %39 = tpu.matmul %29, %12, %cst_16 {dimension_numbers = #tpu.dot_dimension_numbers<[1], [0], [0], [1], [0, 0, 1, 1], [], []>} : vector<144x128xbf16>, vector<128x128xbf16>, vector<144x128xf32> -> vector<144x128xf32>
    %40 = arith.addf %39, %38 : vector<144x128xf32>
    %cst_17 = arith.constant 0.000000e+00 : f32
    %41 = vector.broadcast %cst_17 : f32 to vector<144x128xf32>
    %42 = arith.maximumf %40, %41 : vector<144x128xf32>
    %43 = arith.truncf %42 : vector<144x128xf32> to vector<144x128xbf16>
    %44 = vector.extract_strided_slice %15 {offsets = [4, 0], sizes = [1, 128], strides = [1, 1]} : vector<8x128xf32> to vector<1x128xf32>
    %45 = vector.extract_strided_slice %15 {offsets = [5, 0], sizes = [1, 128], strides = [1, 1]} : vector<8x128xf32> to vector<1x128xf32>
    %46 = vector.shape_cast %10 : vector<144x1xi1> to vector<144x1xi1>
    %47 = vector.broadcast %46 : vector<144x1xi1> to vector<144x128xi1>
    %48 = vector.shape_cast %44 : vector<1x128xf32> to vector<1x128xf32>
    %49 = vector.broadcast %48 : vector<1x128xf32> to vector<144x128xf32>
    %50 = vector.shape_cast %45 : vector<1x128xf32> to vector<1x128xf32>
    %51 = vector.broadcast %50 : vector<1x128xf32> to vector<144x128xf32>
    %52 = arith.select %47, %49, %51 : vector<144x128xi1>, vector<144x128xf32>
    %cst_18 = arith.constant dense<0.000000e+00> : vector<144x128xf32>
    %53 = tpu.matmul %43, %13, %cst_18 {dimension_numbers = #tpu.dot_dimension_numbers<[1], [0], [0], [1], [0, 0, 1, 1], [], []>} : vector<144x128xbf16>, vector<128x128xbf16>, vector<144x128xf32> -> vector<144x128xf32>
    %54 = arith.addf %53, %52 : vector<144x128xf32>
    %cst_19 = arith.constant 0.000000e+00 : f32
    %55 = vector.broadcast %cst_19 : f32 to vector<144x128xf32>
    %56 = arith.maximumf %54, %55 : vector<144x128xf32>
    %57 = vector.extract_strided_slice %56 {offsets = [0, 0], sizes = [16, 128], strides = [1, 1]} : vector<144x128xf32> to vector<16x128xf32>
    %58 = arith.truncf %57 : vector<16x128xf32> to vector<16x128xbf16>
    %59 = vector.extract_strided_slice %56 {offsets = [16, 0], sizes = [128, 128], strides = [1, 1]} : vector<144x128xf32> to vector<128x128xf32>
    %60 = arith.truncf %59 : vector<128x128xf32> to vector<128x128xbf16>
    %cst_20 = arith.constant dense<0.000000e+00> : vector<16x128xf32>
    %61 = tpu.matmul %58, %60, %cst_20 {dimension_numbers = #tpu.dot_dimension_numbers<[1], [1], [0], [0], [0, 0, 1, 0], [], []>} : vector<16x128xbf16>, vector<128x128xbf16>, vector<16x128xf32> -> vector<16x128xf32>
    %c0_21 = arith.constant 0 : index
    %c0_22 = arith.constant 0 : index
    %62 = vector.load %arg3[%c0_21, %c0_22] : memref<16x128xf32, #tpu.memory_space<vmem>>, vector<16x128xf32>
    tpu.vector_store %arg3[%c0_21, %c0_22], %61 {strides = array<i32>} : memref<16x128xf32, #tpu.memory_space<vmem>>, vector<16x128xf32>,
    return
  }
}

</mosaic_0001>

<llo_original>
// kernel: tpu_custom_call.1
$region0: #{tpu_custom_call.1}
  #allocation0 [shape = 'u32[]', space=smem, size = 0x4, offset = 0x4, fixed_abs, tag = 'smem constant byte address 0x4 - core index']
  #allocation1 [shape = 'u32[144,128]{1,0:T(1,128)}', space=vmem, size = 0x12000, scoped, tag = 'internal scratch']
  #allocation2 [shape = 'f32[144,128]{1,0:T(8,128)}', space=vmem, size = 0x12000, scoped, tag = 'scratch operand']
  %s0 = inlined_call_operand.hbm [shape: f32[16,32], index: 0, kind: input, shape index: {}]
  %s1 = inlined_call_operand.hbm [shape: f32[12,24], index: 1, kind: input, shape index: {}]
  %s2 = inlined_call_operand.hbm [shape: bf16[392,128], index: 2, kind: input, shape index: {}]
  %s3 = inlined_call_operand.hbm [shape: f32[16,128], index: 3, kind: output, shape index: {}]
  %s4 = sld [smem:[#allocation0]]
  $region34: #{tpu_custom_call.1} parent=0
    _
  %s6 = ssub.s32 1, %s4
  %s7 = scalar_select 0, %s6, %s4
  $region1: #{tpu_custom_call.1} parent=0
    #allocation3 [shape = 'u8[8192]{0}', space=vmem, size = 0x2000, scoped, tag = 'input window, operand 0, single buffered']
    #allocation4 [shape = 's32[1]{0}', space=sflag, size = 0x4, scoped, tag = 'scoped memory for tpu_custom_call.1']
    #allocation5 [shape = 's32[1]{0}', space=sflag, size = 0x4, scoped, tag = 'scoped memory for tpu_custom_call.1']
    #allocation6 [shape = 'u8[8192]{0}', space=vmem, size = 0x2000, scoped, tag = 'input window, operand 1, single buffered']
    #allocation7 [shape = 's32[1]{0}', space=sflag, size = 0x4, scoped, tag = 'scoped memory for tpu_custom_call.1']
    #allocation8 [shape = 'u8[100352]{0}', space=vmem, size = 0x18800, scoped, tag = 'input window, operand 2, single buffered']
    #allocation9 [shape = 'u8[8192]{0}', space=vmem, size = 0x2000, scoped, tag = 'output window, operand 0, single buffered']
    %8 = vsyncpa [#allocation4], 0
    %9 = vsyncpa [#allocation7], 0
    %10 = vsyncpa [#allocation5], 0
    // Predicated region
    $region2: #{tpu_custom_call.1} parent=1 // pred_check
      _
    $region3: #{tpu_custom_call.1} parent=1 // pred_check_branch
      %12 = sbr.rel (0) target = $region5
    $region4: #{tpu_custom_call.1} parent=1 // pred_region
      %s14 = ssub.s32 256, 256
      %15 = vsyncadd [#allocation4], %s14
      %s16 = sshll.u32 [#allocation3], 4
      %s17 = int_to_ptr.vmem [resolvable:$true] %s16
      %22 = dma.hbm_to_vmem [thread:$0]  %s0, 256, %s17, [#allocation4], 128, 128, 8
    $region5: #{tpu_custom_call.1} parent=1 // pred_fallthru
      _
    // Predicated region
    $region6: #{tpu_custom_call.1} parent=1 // pred_check
      _
    $region7: #{tpu_custom_call.1} parent=1 // pred_check_branch
      %24 = sbr.rel (0) target = $region9
    $region8: #{tpu_custom_call.1} parent=1 // pred_region
      %s26 = ssub.s32 256, 256
      %27 = vsyncadd [#allocation7], %s26
      %s28 = sshll.u32 [#allocation6], 4
      %s29 = int_to_ptr.vmem [resolvable:$true] %s28
      %34 = dma.hbm_to_vmem [thread:$0]  %s1, 256, %s29, [#allocation7], 128, 128, 8
    $region9: #{tpu_custom_call.1} parent=1 // pred_fallthru
      _
    // Predicated region
    $region10: #{tpu_custom_call.1} parent=1 // pred_check
      _
    $region11: #{tpu_custom_call.1} parent=1 // pred_check_branch
      %36 = sbr.rel (0) target = $region13
    $region12: #{tpu_custom_call.1} parent=1 // pred_region
      %s38 = ssub.s32 3136, 3136
      %39 = vsyncadd [#allocation7], %s38
      %s40 = sshll.u32 [#allocation8], 4
      %s41 = int_to_ptr.vmem [resolvable:$true] %s40
      %46 = dma.hbm_to_vmem [thread:$0]  %s2, 3136, %s41, [#allocation7], 64, 64, 4
    $region13: #{tpu_custom_call.1} parent=1 // pred_fallthru
      _
    // Predicated region
    $region14: #{tpu_custom_call.1} parent=1 // pred_check
      _
    $region15: #{tpu_custom_call.1} parent=1 // pred_check_branch
      %48 = sbr.rel (0) target = $region17
    $region16: #{tpu_custom_call.1} parent=1 // pred_region
      %49 = dma.done [#allocation4], 256
    $region17: #{tpu_custom_call.1} parent=1 // pred_fallthru
      _
    // Predicated region
    $region18: #{tpu_custom_call.1} parent=1 // pred_check
      _
    $region19: #{tpu_custom_call.1} parent=1 // pred_check_branch
      %51 = sbr.rel (0) target = $region21
    $region20: #{tpu_custom_call.1} parent=1 // pred_region
      %52 = dma.done [#allocation7], 256
    $region21: #{tpu_custom_call.1} parent=1 // pred_fallthru
      _
    // Predicated region
    $region22: #{tpu_custom_call.1} parent=1 // pred_check
      _
    $region23: #{tpu_custom_call.1} parent=1 // pred_check_branch
      %54 = sbr.rel (0) target = $region25
    $region24: #{tpu_custom_call.1} parent=1 // pred_region
      %55 = dma.done [#allocation7], 3136
    $region25: #{tpu_custom_call.1} parent=1 // pred_fallthru
      _
    %57 = vst [vmem:[#allocation2] sm:$0xff] 0.0
    %58 = vst [vmem:[#allocation2 + $0x8] sm:$0xff] 0.0
    %59 = vst [vmem:[#allocation2 + $0x10] sm:$0xff] 0.0
    %60 = vst [vmem:[#allocation2 + $0x18] sm:$0xff] 0.0
    %61 = vst [vmem:[#allocation2 + $0x20] sm:$0xff] 0.0
    %62 = vst [vmem:[#allocation2 + $0x28] sm:$0xff] 0.0
    %63 = vst [vmem:[#allocation2 + $0x30] sm:$0xff] 0.0
    %64 = vst [vmem:[#allocation2 + $0x38] sm:$0xff] 0.0
    %65 = vst [vmem:[#allocation2 + $0x40] sm:$0xff] 0.0
    %66 = vst [vmem:[#allocation2 + $0x48] sm:$0xff] 0.0
    %67 = vst [vmem:[#allocation2 + $0x50] sm:$0xff] 0.0
    %68 = vst [vmem:[#allocation2 + $0x58] sm:$0xff] 0.0
    %69 = vst [vmem:[#allocation2 + $0x60] sm:$0xff] 0.0
    %70 = vst [vmem:[#allocation2 + $0x68] sm:$0xff] 0.0
    %71 = vst [vmem:[#allocation2 + $0x70] sm:$0xff] 0.0
    %72 = vst [vmem:[#allocation2 + $0x78] sm:$0xff] 0.0
    %73 = vst [vmem:[#allocation2 + $0x80] sm:$0xff] 0.0
    %74 = vst [vmem:[#allocation2 + $0x88] sm:$0xff] 0.0
    %v75 = vld [vmem:[#allocation3] sm:$0xff]
    %v76 = vld [vmem:[#allocation3 + $0x8] sm:$0xff]
    %vm77 = vcmask 261120
    %78 = vst.msk [vmem:[#allocation2] sm:$0xff] %vm77, %v75
    %79 = vst.msk [vmem:[#allocation2 + $0x8] sm:$0xff] %vm77, %v76
    %v80 = vld [vmem:[#allocation6] sm:$0xff]
    %v81 = vld [vmem:[#allocation6 + $0x8] sm:$0xf]
    %84 = vrot.lane.b32.xlu0 %v80, 32
    %v85 = vpop.permute.xlu0 %84
    %86 = vrot.lane.b32.xlu0 %v81, 32
    %v87 = vpop.permute.xlu0 %86
    %vm90 = vcmask 457984
    %91 = vst.msk [vmem:[#allocation2 + $0x10] sm:$0xff] %vm90, %v85
    %vm92 = vcmask 453888
    %93 = vst.msk [vmem:[#allocation2 + $0x18] sm:$0xf] %vm92, %v87
    %v94 = vld [vmem:[#allocation2] sm:$0xff]
    %v95 = vld [vmem:[#allocation2 + $0x8] sm:$0xff]
    %v96 = vld [vmem:[#allocation2 + $0x10] sm:$0xff]
    %v97 = vld [vmem:[#allocation2 + $0x18] sm:$0xff]
    %v98 = vld [vmem:[#allocation2 + $0x20] sm:$0xff]
    %v99 = vld [vmem:[#allocation2 + $0x28] sm:$0xff]
    %v100 = vld [vmem:[#allocation2 + $0x30] sm:$0xff]
    %v101 = vld [vmem:[#allocation2 + $0x38] sm:$0xff]
    %v102 = vld [vmem:[#allocation2 + $0x40] sm:$0xff]
    %v103 = vld [vmem:[#allocation2 + $0x48] sm:$0xff]
    %v104 = vld [vmem:[#allocation2 + $0x50] sm:$0xff]
    %v105 = vld [vmem:[#allocation2 + $0x58] sm:$0xff]
    %v106 = vld [vmem:[#allocation2 + $0x60] sm:$0xff]
    %v107 = vld [vmem:[#allocation2 + $0x68] sm:$0xff]
    %v108 = vld [vmem:[#allocation2 + $0x70] sm:$0xff]
    %v109 = vld [vmem:[#allocation2 + $0x78] sm:$0xff]
    %v110 = vld [vmem:[#allocation2 + $0x80] sm:$0xff]
    %v111 = vld [vmem:[#allocation2 + $0x88] sm:$0xff]
    %v112 = vpack.c.bf16 %v95, %v94
    %v113 = vpack.c.bf16 %v97, %v96
    %v114 = vpack.c.bf16 %v99, %v98
    %v115 = vpack.c.bf16 %v101, %v100
    %v116 = vpack.c.bf16 %v103, %v102
    %v117 = vpack.c.bf16 %v105, %v104
    %v118 = vpack.c.bf16 %v107, %v106
    %v119 = vpack.c.bf16 %v109, %v108
    %v120 = vpack.c.bf16 %v111, %v110
    %v121 = vlaneseq
    %v122 = vshrl.u32 %v121, 7
    %v123 = vadd.s32 %v122, 8
    %v124 = vadd.s32 %v122, 16
    %v125 = vadd.s32 %v122, 24
    %v126 = vadd.s32 %v122, 32
    %v127 = vadd.s32 %v122, 40
    %v128 = vadd.s32 %v122, 48
    %v129 = vadd.s32 %v122, 56
    %v130 = vadd.s32 %v122, 64
    %v131 = vadd.s32 %v122, 72
    %v132 = vadd.s32 %v122, 80
    %v133 = vadd.s32 %v122, 88
    %v134 = vadd.s32 %v122, 96
    %v135 = vadd.s32 %v122, 104
    %v136 = vadd.s32 %v122, 112
    %v137 = vadd.s32 %v122, 120
    %v138 = vadd.s32 %v122, 128
    %v139 = vadd.s32 %v122, 136
    %vm140 = vcmp.lt.s32.totalorder %v122, 16
    %vm141 = vcmp.lt.s32.totalorder %v123, 16
    %vm142 = vcmp.lt.s32.totalorder %v124, 16
    %vm143 = vcmp.lt.s32.totalorder %v125, 16
    %vm144 = vcmp.lt.s32.totalorder %v126, 16
    %vm145 = vcmp.lt.s32.totalorder %v127, 16
    %vm146 = vcmp.lt.s32.totalorder %v128, 16
    %vm147 = vcmp.lt.s32.totalorder %v129, 16
    %vm148 = vcmp.lt.s32.totalorder %v130, 16
    %vm149 = vcmp.lt.s32.totalorder %v131, 16
    %vm150 = vcmp.lt.s32.totalorder %v132, 16
    %vm151 = vcmp.lt.s32.totalorder %v133, 16
    %vm152 = vcmp.lt.s32.totalorder %v134, 16
    %vm153 = vcmp.lt.s32.totalorder %v135, 16
    %vm154 = vcmp.lt.s32.totalorder %v136, 16
    %vm155 = vcmp.lt.s32.totalorder %v137, 16
    %vm156 = vcmp.lt.s32.totalorder %v138, 16
    %vm157 = vcmp.lt.s32.totalorder %v139, 16
    %v158 = vld [vmem:[#allocation8] sm:$0xf]
    %v159 = vld [vmem:[#allocation8 + $0x4] sm:$0xf]
    %v160 = vld [vmem:[#allocation8 + $0x8] sm:$0xf]
    %v161 = vld [vmem:[#allocation8 + $0xc] sm:$0xf]
    %v162 = vld [vmem:[#allocation8 + $0x10] sm:$0xf]
    %v163 = vld [vmem:[#allocation8 + $0x14] sm:$0xf]
    %v164 = vld [vmem:[#allocation8 + $0x18] sm:$0xf]
    %v165 = vld [vmem:[#allocation8 + $0x1c] sm:$0xf]
    %v166 = vld [vmem:[#allocation8 + $0x20] sm:$0xf]
    %v167 = vld [vmem:[#allocation8 + $0x24] sm:$0xf]
    %v168 = vld [vmem:[#allocation8 + $0x28] sm:$0xf]
    %v169 = vld [vmem:[#allocation8 + $0x2c] sm:$0xf]
    %v170 = vld [vmem:[#allocation8 + $0x30] sm:$0xf]
    %v171 = vld [vmem:[#allocation8 + $0x34] sm:$0xf]
    %v172 = vld [vmem:[#allocation8 + $0x38] sm:$0xf]
    %v173 = vld [vmem:[#allocation8 + $0x3c] sm:$0xf]
    %v174 = vld [vmem:[#allocation8 + $0x40] sm:$0xf]
    %v175 = vld [vmem:[#allocation8 + $0x44] sm:$0xf]
    %v176 = vld [vmem:[#allocation8 + $0x48] sm:$0xf]
    %v177 = vld [vmem:[#allocation8 + $0x4c] sm:$0xf]
    %v178 = vld [vmem:[#allocation8 + $0x50] sm:$0xf]
    %v179 = vld [vmem:[#allocation8 + $0x54] sm:$0xf]
    %v180 = vld [vmem:[#allocation8 + $0x58] sm:$0xf]
    %v181 = vld [vmem:[#allocation8 + $0x5c] sm:$0xf]
    %v182 = vld [vmem:[#allocation8 + $0x60] sm:$0xf]
    %v183 = vld [vmem:[#allocation8 + $0x64] sm:$0xf]
    %v184 = vld [vmem:[#allocation8 + $0x68] sm:$0xf]
    %v185 = vld [vmem:[#allocation8 + $0x6c] sm:$0xf]
    %v186 = vld [vmem:[#allocation8 + $0x70] sm:$0xf]
    %v187 = vld [vmem:[#allocation8 + $0x74] sm:$0xf]
    %v188 = vld [vmem:[#allocation8 + $0x78] sm:$0xf]
    %v189 = vld [vmem:[#allocation8 + $0x7c] sm:$0xf]
    %v190 = vld [vmem:[#allocation8 + $0x80] sm:$0xf]
    %v191 = vld [vmem:[#allocation8 + $0x84] sm:$0xf]
    %v192 = vld [vmem:[#allocation8 + $0x88] sm:$0xf]
    %v193 = vld [vmem:[#allocation8 + $0x8c] sm:$0xf]
    %v194 = vld [vmem:[#allocation8 + $0x90] sm:$0xf]
    %v195 = vld [vmem:[#allocation8 + $0x94] sm:$0xf]
    %v196 = vld [vmem:[#allocation8 + $0x98] sm:$0xf]
    %v197 = vld [vmem:[#allocation8 + $0x9c] sm:$0xf]
    %v198 = vld [vmem:[#allocation8 + $0xa0] sm:$0xf]
    %v199 = vld [vmem:[#allocation8 + $0xa4] sm:$0xf]
    %v200 = vld [vmem:[#allocation8 + $0xa8] sm:$0xf]
    %v201 = vld [vmem:[#allocation8 + $0xac] sm:$0xf]
    %v202 = vld [vmem:[#allocation8 + $0xb0] sm:$0xf]
    %v203 = vld [vmem:[#allocation8 + $0xb4] sm:$0xf]
    %v204 = vld [vmem:[#allocation8 + $0xb8] sm:$0xf]
    %v205 = vld [vmem:[#allocation8 + $0xbc] sm:$0xf]
    %v206 = vld [vmem:[#allocation8 + $0xc0] sm:$0xf]
    %v207 = vunpack.c.l.bf16 %v206
    %v208 = vsel %vm140, 1, 0
    %v209 = vsel %vm141, 1, 0
    %v210 = vsel %vm142, 1, 0
    %v211 = vsel %vm143, 1, 0
    %v212 = vsel %vm144, 1, 0
    %v213 = vsel %vm145, 1, 0
    %v214 = vsel %vm146, 1, 0
    %v215 = vsel %vm147, 1, 0
    %v216 = vsel %vm148, 1, 0
    %v217 = vsel %vm149, 1, 0
    %v218 = vsel %vm150, 1, 0
    %v219 = vsel %vm151, 1, 0
    %v220 = vsel %vm152, 1, 0
    %v221 = vsel %vm153, 1, 0
    %v222 = vsel %vm154, 1, 0
    %v223 = vsel %vm155, 1, 0
    %v224 = vsel %vm156, 1, 0
    %v225 = vsel %vm157, 1, 0
    %vm226 = vcmp.eq.s32.totalorder %v208, 1
    %vm227 = vcmp.eq.s32.totalorder %v209, 1
    %vm228 = vcmp.eq.s32.totalorder %v210, 1
    %vm229 = vcmp.eq.s32.totalorder %v211, 1
    %vm230 = vcmp.eq.s32.totalorder %v212, 1
    %vm231 = vcmp.eq.s32.totalorder %v213, 1
    %vm232 = vcmp.eq.s32.totalorder %v214, 1
    %vm233 = vcmp.eq.s32.totalorder %v215, 1
    %vm234 = vcmp.eq.s32.totalorder %v216, 1
    %vm235 = vcmp.eq.s32.totalorder %v217, 1
    %vm236 = vcmp.eq.s32.totalorder %v218, 1
    %vm237 = vcmp.eq.s32.totalorder %v219, 1
    %vm238 = vcmp.eq.s32.totalorder %v220, 1
    %vm239 = vcmp.eq.s32.totalorder %v221, 1
    %vm240 = vcmp.eq.s32.totalorder %v222, 1
    %vm241 = vcmp.eq.s32.totalorder %v223, 1
    %vm242 = vcmp.eq.s32.totalorder %v224, 1
    %vm243 = vcmp.eq.s32.totalorder %v225, 1
    %v244 = vlaneseq
    %v245 = vshrl.u32 %v244, 7
    %v246 = vsub.s32 0, %v245
    %v247 = vrot.slane %v207, %v246
    %v248 = vlaneseq
    %v249 = vshrl.u32 %v248, 7
    %v250 = vsub.s32 1, %v249
    %v251 = vrot.slane %v207, %v250
    %v252 = vsel %vm226, %v247, %v251
    %v253 = vsel %vm227, %v247, %v251
    %v254 = vsel %vm228, %v247, %v251
    %v255 = vsel %vm229, %v247, %v251
    %v256 = vsel %vm230, %v247, %v251
    %v257 = vsel %vm231, %v247, %v251
    %v258 = vsel %vm232, %v247, %v251
    %v259 = vsel %vm233, %v247, %v251
    %v260 = vsel %vm234, %v247, %v251
    %v261 = vsel %vm235, %v247, %v251
    %v262 = vsel %vm236, %v247, %v251
    %v263 = vsel %vm237, %v247, %v251
    %v264 = vsel %vm238, %v247, %v251
    %v265 = vsel %vm239, %v247, %v251
    %v266 = vsel %vm240, %v247, %v251
    %v267 = vsel %vm241, %v247, %v251
    %v268 = vsel %vm242, %v247, %v251
    %v269 = vsel %vm243, %v247, %v251
    %v286 = vunpack.c.l.b16 %v158
    %v287 = vunpack.c.l.b16 %v159
    %v288 = vunpack.c.l.b16 %v160
    %v289 = vunpack.c.l.b16 %v161
    %v290 = vunpack.c.l.b16 %v162
    %v291 = vunpack.c.l.b16 %v163
    %v292 = vunpack.c.l.b16 %v164
    %v293 = vunpack.c.l.b16 %v165
    %v294 = vunpack.c.l.b16 %v166
    %v295 = vunpack.c.l.b16 %v167
    %v296 = vunpack.c.l.b16 %v168
    %v297 = vunpack.c.l.b16 %v169
    %v298 = vunpack.c.l.b16 %v170
    %v299 = vunpack.c.l.b16 %v171
    %v300 = vunpack.c.l.b16 %v172
    %v301 = vunpack.c.l.b16 %v173
    %v302 = vpack.c.b16 %v287, %v286
    %v303 = vpack.c.b16 %v289, %v288
    %v304 = vpack.c.b16 %v291, %v290
    %v305 = vpack.c.b16 %v293, %v292
    %v306 = vpack.c.b16 %v295, %v294
    %v307 = vpack.c.b16 %v297, %v296
    %v308 = vpack.c.b16 %v299, %v298
    %v309 = vpack.c.b16 %v301, %v300
    %318 = vmatprep.subr.bf16.mxu0 0
    %319 = vmatpush1.bf16.msra.mxu0 %v302
    %320 = vmatprep.subr.bf16.mxu0 0
    %321 = vmatpush1.bf16.msra.mxu0 %v303
    %322 = vmatprep.subr.bf16.mxu0 0
    %323 = vmatpush1.bf16.msra.mxu0 %v304
    %324 = vmatprep.subr.bf16.mxu0 0
    %325 = vmatpush1.bf16.msra.mxu0 %v305
    %326 = vmatprep.subr.bf16.mxu0 0
    %327 = vmatpush1.bf16.msra.mxu0 %v306
    %328 = vmatprep.subr.bf16.mxu0 0
    %329 = vmatpush1.bf16.msra.mxu0 %v307
    %330 = vmatprep.subr.bf16.mxu0 0
    %331 = vmatpush1.bf16.msra.mxu0 %v308
    %332 = vmatprep.subr.bf16.mxu0 0
    %333 = vmatpush1.bf16.msra.mxu0 %v309
    %334 = vmatprep.subr.bf16.mxu0 0
    %335 = vmatpush1.bf16.msra.mxu0 0
    %336 = vmatprep.subr.bf16.mxu0 0
    %337 = vmatpush1.bf16.msra.mxu0 0
    %338 = vmatprep.subr.bf16.mxu0 0
    %339 = vmatpush1.bf16.msra.mxu0 0
    %340 = vmatprep.subr.bf16.mxu0 0
    %341 = vmatpush1.bf16.msra.mxu0 0
    %342 = vmatprep.subr.bf16.mxu0 0
    %343 = vmatpush1.bf16.msra.mxu0 0
    %344 = vmatprep.subr.bf16.mxu0 0
    %345 = vmatpush1.bf16.msra.mxu0 0
    %346 = vmatprep.subr.bf16.mxu0 0
    %347 = vmatpush1.bf16.msra.mxu0 0
    %348 = vmatprep.subr.bf16.mxu0 0
    %349 = vmatpush1.bf16.msra.mxu0 0
    %350 = vmatprep.mubr.bf16.mxu0 0
    %351 = vmatmul.mubr.bf16.gmra.mrb[0].mxu0 %v112
    %v352 = vpop.f32.mrb[0].mxu0
    %v353 = vadd.f32 %v252, %v352
    %v354 = vpop.f32.mrb[0].mxu0
    %v355 = vpop.f32.mrb[0].mxu0
    %v356 = vadd.f32 %v253, %v355
    %v357 = vpop.f32.mrb[0].mxu0
    %358 = vmatprep.mubr.bf16.mxu0 0
    %359 = vmatmul.mubr.bf16.gmra.mrb[0].mxu0 %v113
    %v360 = vpop.f32.mrb[0].mxu0
    %v361 = vadd.f32 %v254, %v360
    %v362 = vpop.f32.mrb[0].mxu0
    %v363 = vpop.f32.mrb[0].mxu0
    %v364 = vadd.f32 %v255, %v363
    %v365 = vpop.f32.mrb[0].mxu0
    %366 = vmatprep.mubr.bf16.mxu0 0
    %367 = vmatmul.mubr.bf16.gmra.mrb[0].mxu0 %v114
    %v368 = vpop.f32.mrb[0].mxu0
    %v369 = vadd.f32 %v256, %v368
    %v370 = vpop.f32.mrb[0].mxu0
    %v371 = vpop.f32.mrb[0].mxu0
    %v372 = vadd.f32 %v257, %v371
    %v373 = vpop.f32.mrb[0].mxu0
    %374 = vmatprep.mubr.bf16.mxu0 0
    %375 = vmatmul.mubr.bf16.gmra.mrb[0].mxu0 %v115
    %v376 = vpop.f32.mrb[0].mxu0
    %v377 = vadd.f32 %v258, %v376
    %v378 = vpop.f32.mrb[0].mxu0
    %v379 = vpop.f32.mrb[0].mxu0
    %v380 = vadd.f32 %v259, %v379
    %v381 = vpop.f32.mrb[0].mxu0
    %382 = vmatprep.mubr.bf16.mxu0 0
    %383 = vmatmul.mubr.bf16.gmra.mrb[0].mxu0 %v116
    %v384 = vpop.f32.mrb[0].mxu0
    %v385 = vadd.f32 %v260, %v384
    %v386 = vpop.f32.mrb[0].mxu0
    %v387 = vpop.f32.mrb[0].mxu0
    %v388 = vadd.f32 %v261, %v387
    %v389 = vpop.f32.mrb[0].mxu0
    %390 = vmatprep.mubr.bf16.mxu0 0
    %391 = vmatmul.mubr.bf16.gmra.mrb[0].mxu0 %v117
    %v392 = vpop.f32.mrb[0].mxu0
    %v393 = vadd.f32 %v262, %v392
    %v394 = vpop.f32.mrb[0].mxu0
    %v395 = vpop.f32.mrb[0].mxu0
    %v396 = vadd.f32 %v263, %v395
    %v397 = vpop.f32.mrb[0].mxu0
    %398 = vmatprep.mubr.bf16.mxu0 0
    %399 = vmatmul.mubr.bf16.gmra.mrb[0].mxu0 %v118
    %v400 = vpop.f32.mrb[0].mxu0
    %v401 = vadd.f32 %v264, %v400
    %v402 = vpop.f32.mrb[0].mxu0
    %v403 = vpop.f32.mrb[0].mxu0
    %v404 = vadd.f32 %v265, %v403
    %v405 = vpop.f32.mrb[0].mxu0
    %406 = vmatprep.mubr.bf16.mxu0 0
    %407 = vmatmul.mubr.bf16.gmra.mrb[0].mxu0 %v119
    %v408 = vpop.f32.mrb[0].mxu0
    %v409 = vadd.f32 %v266, %v408
    %v410 = vpop.f32.mrb[0].mxu0
    %v411 = vpop.f32.mrb[0].mxu0
    %v412 = vadd.f32 %v267, %v411
    %v413 = vpop.f32.mrb[0].mxu0
    %414 = vmatprep.mubr.bf16.mxu0 0
    %415 = vmatmul.mubr.bf16.gmra.mrb[0].mxu0 %v120
    %v416 = vpop.f32.mrb[0].mxu0
    %v417 = vadd.f32 %v268, %v416
    %v418 = vpop.f32.mrb[0].mxu0
    %v419 = vpop.f32.mrb[0].mxu0
    %v420 = vadd.f32 %v269, %v419
    %v421 = vpop.f32.mrb[0].mxu0
    %422 = vdwg.mxu0
    %v423 = vmax.f32 %v353, 0.0
    %v424 = vmax.f32 %v356, 0.0
    %v425 = vmax.f32 %v361, 0.0
    %v426 = vmax.f32 %v364, 0.0
    %v427 = vmax.f32 %v369, 0.0
    %v428 = vmax.f32 %v372, 0.0
    %v429 = vmax.f32 %v377, 0.0
    %v430 = vmax.f32 %v380, 0.0
    %v431 = vmax.f32 %v385, 0.0
    %v432 = vmax.f32 %v388, 0.0
    %v433 = vmax.f32 %v393, 0.0
    %v434 = vmax.f32 %v396, 0.0
    %v435 = vmax.f32 %v401, 0.0
    %v436 = vmax.f32 %v404, 0.0
    %v437 = vmax.f32 %v409, 0.0
    %v438 = vmax.f32 %v412, 0.0
    %v439 = vmax.f32 %v417, 0.0
    %v440 = vmax.f32 %v420, 0.0
    %v441 = vpack.c.bf16 %v424, %v423
    %v442 = vpack.c.bf16 %v426, %v425
    %v443 = vpack.c.bf16 %v428, %v427
    %v444 = vpack.c.bf16 %v430, %v429
    %v445 = vpack.c.bf16 %v432, %v431
    %v446 = vpack.c.bf16 %v434, %v433
    %v447 = vpack.c.bf16 %v436, %v435
    %v448 = vpack.c.bf16 %v438, %v437
    %v449 = vpack.c.bf16 %v440, %v439
    %v450 = vlaneseq
    %v451 = vshrl.u32 %v450, 7
    %v452 = vsub.s32 2, %v451
    %v453 = vrot.slane %v207, %v452
    %v454 = vlaneseq
    %v455 = vshrl.u32 %v454, 7
    %v456 = vsub.s32 3, %v455
    %v457 = vrot.slane %v207, %v456
    %v458 = vsel %vm226, %v453, %v457
    %v459 = vsel %vm227, %v453, %v457
    %v460 = vsel %vm228, %v453, %v457
    %v461 = vsel %vm229, %v453, %v457
    %v462 = vsel %vm230, %v453, %v457
    %v463 = vsel %vm231, %v453, %v457
    %v464 = vsel %vm232, %v453, %v457
    %v465 = vsel %vm233, %v453, %v457
    %v466 = vsel %vm234, %v453, %v457
    %v467 = vsel %vm235, %v453, %v457
    %v468 = vsel %vm236, %v453, %v457
    %v469 = vsel %vm237, %v453, %v457
    %v470 = vsel %vm238, %v453, %v457
    %v471 = vsel %vm239, %v453, %v457
    %v472 = vsel %vm240, %v453, %v457
    %v473 = vsel %vm241, %v453, %v457
    %v474 = vsel %vm242, %v453, %v457
    %v475 = vsel %vm243, %v453, %v457
    %v492 = vunpack.c.l.b16 %v174
    %v493 = vunpack.c.l.b16 %v175
    %v494 = vunpack.c.l.b16 %v176
    %v495 = vunpack.c.l.b16 %v177
    %v496 = vunpack.c.l.b16 %v178
    %v497 = vunpack.c.l.b16 %v179
    %v498 = vunpack.c.l.b16 %v180
    %v499 = vunpack.c.l.b16 %v181
    %v500 = vunpack.c.l.b16 %v182
    %v501 = vunpack.c.l.b16 %v183
    %v502 = vunpack.c.l.b16 %v184
    %v503 = vunpack.c.l.b16 %v185
    %v504 = vunpack.c.l.b16 %v186
    %v505 = vunpack.c.l.b16 %v187
    %v506 = vunpack.c.l.b16 %v188
    %v507 = vunpack.c.l.b16 %v189
    %v508 = vpack.c.b16 %v493, %v492
    %v509 = vpack.c.b16 %v495, %v494
    %v510 = vpack.c.b16 %v497, %v496
    %v511 = vpack.c.b16 %v499, %v498
    %v512 = vpack.c.b16 %v501, %v500
    %v513 = vpack.c.b16 %v503, %v502
    %v514 = vpack.c.b16 %v505, %v504
    %v515 = vpack.c.b16 %v507, %v506
    %524 = vmatprep.subr.bf16.mxu0 0
    %525 = vmatpush1.bf16.msra.mxu0 %v508
    %526 = vmatprep.subr.bf16.mxu0 0
    %527 = vmatpush1.bf16.msra.mxu0 %v509
    %528 = vmatprep.subr.bf16.mxu0 0
    %529 = vmatpush1.bf16.msra.mxu0 %v510
    %530 = vmatprep.subr.bf16.mxu0 0
    %531 = vmatpush1.bf16.msra.mxu0 %v511
    %532 = vmatprep.subr.bf16.mxu0 0
    %533 = vmatpush1.bf16.msra.mxu0 %v512
    %534 = vmatprep.subr.bf16.mxu0 0
    %535 = vmatpush1.bf16.msra.mxu0 %v513
    %536 = vmatprep.subr.bf16.mxu0 0
    %537 = vmatpush1.bf16.msra.mxu0 %v514
    %538 = vmatprep.subr.bf16.mxu0 0
    %539 = vmatpush1.bf16.msra.mxu0 %v515
    %540 = vmatprep.subr.bf16.mxu0 0
    %541 = vmatpush1.bf16.msra.mxu0 0
    %542 = vmatprep.subr.bf16.mxu0 0
    %543 = vmatpush1.bf16.msra.mxu0 0
    %544 = vmatprep.subr.bf16.mxu0 0
    %545 = vmatpush1.bf16.msra.mxu0 0
    %546 = vmatprep.subr.bf16.mxu0 0
    %547 = vmatpush1.bf16.msra.mxu0 0
    %548 = vmatprep.subr.bf16.mxu0 0
    %549 = vmatpush1.bf16.msra.mxu0 0
    %550 = vmatprep.subr.bf16.mxu0 0
    %551 = vmatpush1.bf16.msra.mxu0 0
    %552 = vmatprep.subr.bf16.mxu0 0
    %553 = vmatpush1.bf16.msra.mxu0 0
    %554 = vmatprep.subr.bf16.mxu0 0
    %555 = vmatpush1.bf16.msra.mxu0 0
    %556 = vmatprep.mubr.bf16.mxu0 0
    %557 = vmatmul.mubr.bf16.gmra.mrb[0].mxu0 %v441
    %v558 = vpop.f32.mrb[0].mxu0
    %v559 = vadd.f32 %v458, %v558
    %v560 = vpop.f32.mrb[0].mxu0
    %v561 = vpop.f32.mrb[0].mxu0
    %v562 = vadd.f32 %v459, %v561
    %v563 = vpop.f32.mrb[0].mxu0
    %564 = vmatprep.mubr.bf16.mxu0 0
    %565 = vmatmul.mubr.bf16.gmra.mrb[0].mxu0 %v442
    %v566 = vpop.f32.mrb[0].mxu0
    %v567 = vadd.f32 %v460, %v566
    %v568 = vpop.f32.mrb[0].mxu0
    %v569 = vpop.f32.mrb[0].mxu0
    %v570 = vadd.f32 %v461, %v569
    %v571 = vpop.f32.mrb[0].mxu0
    %572 = vmatprep.mubr.bf16.mxu0 0
    %573 = vmatmul.mubr.bf16.gmra.mrb[0].mxu0 %v443
    %v574 = vpop.f32.mrb[0].mxu0
    %v575 = vadd.f32 %v462, %v574
    %v576 = vpop.f32.mrb[0].mxu0
    %v577 = vpop.f32.mrb[0].mxu0
    %v578 = vadd.f32 %v463, %v577
    %v579 = vpop.f32.mrb[0].mxu0
    %580 = vmatprep.mubr.bf16.mxu0 0
    %581 = vmatmul.mubr.bf16.gmra.mrb[0].mxu0 %v444
    %v582 = vpop.f32.mrb[0].mxu0
    %v583 = vadd.f32 %v464, %v582
    %v584 = vpop.f32.mrb[0].mxu0
    %v585 = vpop.f32.mrb[0].mxu0
    %v586 = vadd.f32 %v465, %v585
    %v587 = vpop.f32.mrb[0].mxu0
    %588 = vmatprep.mubr.bf16.mxu0 0
    %589 = vmatmul.mubr.bf16.gmra.mrb[0].mxu0 %v445
    %v590 = vpop.f32.mrb[0].mxu0
    %v591 = vadd.f32 %v466, %v590
    %v592 = vpop.f32.mrb[0].mxu0
    %v593 = vpop.f32.mrb[0].mxu0
    %v594 = vadd.f32 %v467, %v593
    %v595 = vpop.f32.mrb[0].mxu0
    %596 = vmatprep.mubr.bf16.mxu0 0
    %597 = vmatmul.mubr.bf16.gmra.mrb[0].mxu0 %v446
    %v598 = vpop.f32.mrb[0].mxu0
    %v599 = vadd.f32 %v468, %v598
    %v600 = vpop.f32.mrb[0].mxu0
    %v601 = vpop.f32.mrb[0].mxu0
    %v602 = vadd.f32 %v469, %v601
    %v603 = vpop.f32.mrb[0].mxu0
    %604 = vmatprep.mubr.bf16.mxu0 0
    %605 = vmatmul.mubr.bf16.gmra.mrb[0].mxu0 %v447
    %v606 = vpop.f32.mrb[0].mxu0
    %v607 = vadd.f32 %v470, %v606
    %v608 = vpop.f32.mrb[0].mxu0
    %v609 = vpop.f32.mrb[0].mxu0
    %v610 = vadd.f32 %v471, %v609
    %v611 = vpop.f32.mrb[0].mxu0
    %612 = vmatprep.mubr.bf16.mxu0 0
    %613 = vmatmul.mubr.bf16.gmra.mrb[0].mxu0 %v448
    %v614 = vpop.f32.mrb[0].mxu0
    %v615 = vadd.f32 %v472, %v614
    %v616 = vpop.f32.mrb[0].mxu0
    %v617 = vpop.f32.mrb[0].mxu0
    %v618 = vadd.f32 %v473, %v617
    %v619 = vpop.f32.mrb[0].mxu0
    %620 = vmatprep.mubr.bf16.mxu0 0
    %621 = vmatmul.mubr.bf16.gmra.mrb[0].mxu0 %v449
    %v622 = vpop.f32.mrb[0].mxu0
    %v623 = vadd.f32 %v474, %v622
    %v624 = vpop.f32.mrb[0].mxu0
    %v625 = vpop.f32.mrb[0].mxu0
    %v626 = vadd.f32 %v475, %v625
    %v627 = vpop.f32.mrb[0].mxu0
    %628 = vdwg.mxu0
    %v629 = vmax.f32 %v559, 0.0
    %v630 = vmax.f32 %v562, 0.0
    %v631 = vmax.f32 %v567, 0.0
    %v632 = vmax.f32 %v570, 0.0
    %v633 = vmax.f32 %v575, 0.0
    %v634 = vmax.f32 %v578, 0.0
    %v635 = vmax.f32 %v583, 0.0
    %v636 = vmax.f32 %v586, 0.0
    %v637 = vmax.f32 %v591, 0.0
    %v638 = vmax.f32 %v594, 0.0
    %v639 = vmax.f32 %v599, 0.0
    %v640 = vmax.f32 %v602, 0.0
    %v641 = vmax.f32 %v607, 0.0
    %v642 = vmax.f32 %v610, 0.0
    %v643 = vmax.f32 %v615, 0.0
    %v644 = vmax.f32 %v618, 0.0
    %v645 = vmax.f32 %v623, 0.0
    %v646 = vmax.f32 %v626, 0.0
    %v647 = vpack.c.bf16 %v630, %v629
    %v648 = vpack.c.bf16 %v632, %v631
    %v649 = vpack.c.bf16 %v634, %v633
    %v650 = vpack.c.bf16 %v636, %v635
    %v651 = vpack.c.bf16 %v638, %v637
    %v652 = vpack.c.bf16 %v640, %v639
    %v653 = vpack.c.bf16 %v642, %v641
    %v654 = vpack.c.bf16 %v644, %v643
    %v655 = vpack.c.bf16 %v646, %v645
    %v656 = vlaneseq
    %v657 = vshrl.u32 %v656, 7
    %v658 = vsub.s32 4, %v657
    %v659 = vrot.slane %v207, %v658
    %v660 = vlaneseq
    %v661 = vshrl.u32 %v660, 7
    %v662 = vsub.s32 5, %v661
    %v663 = vrot.slane %v207, %v662
    %v664 = vsel %vm226, %v659, %v663
    %v665 = vsel %vm227, %v659, %v663
    %v666 = vsel %vm228, %v659, %v663
    %v667 = vsel %vm229, %v659, %v663
    %v668 = vsel %vm230, %v659, %v663
    %v669 = vsel %vm231, %v659, %v663
    %v670 = vsel %vm232, %v659, %v663
    %v671 = vsel %vm233, %v659, %v663
    %v672 = vsel %vm234, %v659, %v663
    %v673 = vsel %vm235, %v659, %v663
    %v674 = vsel %vm236, %v659, %v663
    %v675 = vsel %vm237, %v659, %v663
    %v676 = vsel %vm238, %v659, %v663
    %v677 = vsel %vm239, %v659, %v663
    %v678 = vsel %vm240, %v659, %v663
    %v679 = vsel %vm241, %v659, %v663
    %v680 = vsel %vm242, %v659, %v663
    %v681 = vsel %vm243, %v659, %v663
    %v698 = vunpack.c.l.b16 %v190
    %v699 = vunpack.c.l.b16 %v191
    %v700 = vunpack.c.l.b16 %v192
    %v701 = vunpack.c.l.b16 %v193
    %v702 = vunpack.c.l.b16 %v194
    %v703 = vunpack.c.l.b16 %v195
    %v704 = vunpack.c.l.b16 %v196
    %v705 = vunpack.c.l.b16 %v197
    %v706 = vunpack.c.l.b16 %v198
    %v707 = vunpack.c.l.b16 %v199
    %v708 = vunpack.c.l.b16 %v200
    %v709 = vunpack.c.l.b16 %v201
    %v710 = vunpack.c.l.b16 %v202
    %v711 = vunpack.c.l.b16 %v203
    %v712 = vunpack.c.l.b16 %v204
    %v713 = vunpack.c.l.b16 %v205
    %v714 = vpack.c.b16 %v699, %v698
    %v715 = vpack.c.b16 %v701, %v700
    %v716 = vpack.c.b16 %v703, %v702
    %v717 = vpack.c.b16 %v705, %v704
    %v718 = vpack.c.b16 %v707, %v706
    %v719 = vpack.c.b16 %v709, %v708
    %v720 = vpack.c.b16 %v711, %v710
    %v721 = vpack.c.b16 %v713, %v712
    %730 = vmatprep.subr.bf16.mxu0 0
    %731 = vmatpush1.bf16.msra.mxu0 %v714
    %732 = vmatprep.subr.bf16.mxu0 0
    %733 = vmatpush1.bf16.msra.mxu0 %v715
    %734 = vmatprep.subr.bf16.mxu0 0
    %735 = vmatpush1.bf16.msra.mxu0 %v716
    %736 = vmatprep.subr.bf16.mxu0 0
    %737 = vmatpush1.bf16.msra.mxu0 %v717
    %738 = vmatprep.subr.bf16.mxu0 0
    %739 = vmatpush1.bf16.msra.mxu0 %v718
    %740 = vmatprep.subr.bf16.mxu0 0
    %741 = vmatpush1.bf16.msra.mxu0 %v719
    %742 = vmatprep.subr.bf16.mxu0 0
    %743 = vmatpush1.bf16.msra.mxu0 %v720
    %744 = vmatprep.subr.bf16.mxu0 0
    %745 = vmatpush1.bf16.msra.mxu0 %v721
    %746 = vmatprep.subr.bf16.mxu0 0
    %747 = vmatpush1.bf16.msra.mxu0 0
    %748 = vmatprep.subr.bf16.mxu0 0
    %749 = vmatpush1.bf16.msra.mxu0 0
    %750 = vmatprep.subr.bf16.mxu0 0
    %751 = vmatpush1.bf16.msra.mxu0 0
    %752 = vmatprep.subr.bf16.mxu0 0
    %753 = vmatpush1.bf16.msra.mxu0 0
    %754 = vmatprep.subr.bf16.mxu0 0
    %755 = vmatpush1.bf16.msra.mxu0 0
    %756 = vmatprep.subr.bf16.mxu0 0
    %757 = vmatpush1.bf16.msra.mxu0 0
    %758 = vmatprep.subr.bf16.mxu0 0
    %759 = vmatpush1.bf16.msra.mxu0 0
    %760 = vmatprep.subr.bf16.mxu0 0
    %761 = vmatpush1.bf16.msra.mxu0 0
    %762 = vmatprep.mubr.bf16.mxu0 0
    %763 = vmatmul.mubr.bf16.gmra.mrb[0].mxu0 %v647
    %v764 = vpop.f32.mrb[0].mxu0
    %v765 = vadd.f32 %v664, %v764
    %v766 = vpop.f32.mrb[0].mxu0
    %v767 = vpop.f32.mrb[0].mxu0
    %v768 = vadd.f32 %v665, %v767
    %v769 = vpop.f32.mrb[0].mxu0
    %770 = vmatprep.mubr.bf16.mxu0 0
    %771 = vmatmul.mubr.bf16.gmra.mrb[0].mxu0 %v648
    %v772 = vpop.f32.mrb[0].mxu0
    %v773 = vadd.f32 %v666, %v772
    %v774 = vpop.f32.mrb[0].mxu0
    %v775 = vpop.f32.mrb[0].mxu0
    %v776 = vadd.f32 %v667, %v775
    %v777 = vpop.f32.mrb[0].mxu0
    %778 = vmatprep.mubr.bf16.mxu0 0
    %779 = vmatmul.mubr.bf16.gmra.mrb[0].mxu0 %v649
    %v780 = vpop.f32.mrb[0].mxu0
    %v781 = vadd.f32 %v668, %v780
    %v782 = vpop.f32.mrb[0].mxu0
    %v783 = vpop.f32.mrb[0].mxu0
    %v784 = vadd.f32 %v669, %v783
    %v785 = vpop.f32.mrb[0].mxu0
    %786 = vmatprep.mubr.bf16.mxu0 0
    %787 = vmatmul.mubr.bf16.gmra.mrb[0].mxu0 %v650
    %v788 = vpop.f32.mrb[0].mxu0
    %v789 = vadd.f32 %v670, %v788
    %v790 = vpop.f32.mrb[0].mxu0
    %v791 = vpop.f32.mrb[0].mxu0
    %v792 = vadd.f32 %v671, %v791
    %v793 = vpop.f32.mrb[0].mxu0
    %794 = vmatprep.mubr.bf16.mxu0 0
    %795 = vmatmul.mubr.bf16.gmra.mrb[0].mxu0 %v651
    %v796 = vpop.f32.mrb[0].mxu0
    %v797 = vadd.f32 %v672, %v796
    %v798 = vpop.f32.mrb[0].mxu0
    %v799 = vpop.f32.mrb[0].mxu0
    %v800 = vadd.f32 %v673, %v799
    %v801 = vpop.f32.mrb[0].mxu0
    %802 = vmatprep.mubr.bf16.mxu0 0
    %803 = vmatmul.mubr.bf16.gmra.mrb[0].mxu0 %v652
    %v804 = vpop.f32.mrb[0].mxu0
    %v805 = vadd.f32 %v674, %v804
    %v806 = vpop.f32.mrb[0].mxu0
    %v807 = vpop.f32.mrb[0].mxu0
    %v808 = vadd.f32 %v675, %v807
    %v809 = vpop.f32.mrb[0].mxu0
    %810 = vmatprep.mubr.bf16.mxu0 0
    %811 = vmatmul.mubr.bf16.gmra.mrb[0].mxu0 %v653
    %v812 = vpop.f32.mrb[0].mxu0
    %v813 = vadd.f32 %v676, %v812
    %v814 = vpop.f32.mrb[0].mxu0
    %v815 = vpop.f32.mrb[0].mxu0
    %v816 = vadd.f32 %v677, %v815
    %v817 = vpop.f32.mrb[0].mxu0
    %818 = vmatprep.mubr.bf16.mxu0 0
    %819 = vmatmul.mubr.bf16.gmra.mrb[0].mxu0 %v654
    %v820 = vpop.f32.mrb[0].mxu0
    %v821 = vadd.f32 %v678, %v820
    %v822 = vpop.f32.mrb[0].mxu0
    %v823 = vpop.f32.mrb[0].mxu0
    %v824 = vadd.f32 %v679, %v823
    %v825 = vpop.f32.mrb[0].mxu0
    %826 = vmatprep.mubr.bf16.mxu0 0
    %827 = vmatmul.mubr.bf16.gmra.mrb[0].mxu0 %v655
    %v828 = vpop.f32.mrb[0].mxu0
    %v829 = vadd.f32 %v680, %v828
    %v830 = vpop.f32.mrb[0].mxu0
    %v831 = vpop.f32.mrb[0].mxu0
    %v832 = vadd.f32 %v681, %v831
    %v833 = vpop.f32.mrb[0].mxu0
    %834 = vdwg.mxu0
    %v835 = vmax.f32 %v765, 0.0
    %v836 = vmax.f32 %v768, 0.0
    %v837 = vmax.f32 %v773, 0.0
    %v838 = vmax.f32 %v776, 0.0
    %v839 = vmax.f32 %v781, 0.0
    %v840 = vmax.f32 %v784, 0.0
    %v841 = vmax.f32 %v789, 0.0
    %v842 = vmax.f32 %v792, 0.0
    %v843 = vmax.f32 %v797, 0.0
    %v844 = vmax.f32 %v800, 0.0
    %v845 = vmax.f32 %v805, 0.0
    %v846 = vmax.f32 %v808, 0.0
    %v847 = vmax.f32 %v813, 0.0
    %v848 = vmax.f32 %v816, 0.0
    %v849 = vmax.f32 %v821, 0.0
    %v850 = vmax.f32 %v824, 0.0
    %v851 = vmax.f32 %v829, 0.0
    %v852 = vmax.f32 %v832, 0.0
    %v853 = vpack.c.bf16 %v836, %v835
    %v854 = vpack.c.bf16 %v838, %v837
    %v855 = vpack.c.bf16 %v840, %v839
    %v856 = vpack.c.bf16 %v842, %v841
    %v857 = vpack.c.bf16 %v844, %v843
    %v858 = vpack.c.bf16 %v846, %v845
    %v859 = vpack.c.bf16 %v848, %v847
    %v860 = vpack.c.bf16 %v850, %v849
    %v861 = vpack.c.bf16 %v852, %v851
    %862 = vmatprep.subr.bf16.mxu0 0
    %863 = vmatpush1.bf16.xpose.msra.mxu0 %v854
    %864 = vmatprep.subr.bf16.mxu0 0
    %865 = vmatpush1.bf16.xpose.msra.mxu0 %v855
    %866 = vmatprep.subr.bf16.mxu0 0
    %867 = vmatpush1.bf16.xpose.msra.mxu0 %v856
    %868 = vmatprep.subr.bf16.mxu0 0
    %869 = vmatpush1.bf16.xpose.msra.mxu0 %v857
    %870 = vmatprep.subr.bf16.mxu0 0
    %871 = vmatpush1.bf16.xpose.msra.mxu0 %v858
    %872 = vmatprep.subr.bf16.mxu0 0
    %873 = vmatpush1.bf16.xpose.msra.mxu0 %v859
    %874 = vmatprep.subr.bf16.mxu0 0
    %875 = vmatpush1.bf16.xpose.msra.mxu0 %v860
    %876 = vmatprep.subr.bf16.mxu0 0
    %877 = vmatpush1.bf16.xpose.msra.mxu0 %v861
    %878 = vmatprep.subr.bf16.mxu0 0
    %879 = vmatpush1.bf16.xpose.msra.mxu0 0
    %880 = vmatprep.subr.bf16.mxu0 0
    %881 = vmatpush1.bf16.xpose.msra.mxu0 0
    %882 = vmatprep.subr.bf16.mxu0 0
    %883 = vmatpush1.bf16.xpose.msra.mxu0 0
    %884 = vmatprep.subr.bf16.mxu0 0
    %885 = vmatpush1.bf16.xpose.msra.mxu0 0
    %886 = vmatprep.subr.bf16.mxu0 0
    %887 = vmatpush1.bf16.xpose.msra.mxu0 0
    %888 = vmatprep.subr.bf16.mxu0 0
    %889 = vmatpush1.bf16.xpose.msra.mxu0 0
    %890 = vmatprep.subr.bf16.mxu0 0
    %891 = vmatpush1.bf16.xpose.msra.mxu0 0
    %892 = vmatprep.subr.bf16.mxu0 0
    %893 = vmatpush1.bf16.xpose.msra.mxu0 0
    %894 = vmatprep.mubr.bf16.mxu0 0
    %895 = vmatmul.mubr.bf16.gmra.mrb[0].mxu0 %v853
    %v896 = vpop.f32.mrb[0].mxu0
    %v897 = vadd.f32 0.0, %v896
    %v898 = vpop.f32.mrb[0].mxu0
    %v899 = vpop.f32.mrb[0].mxu0
    %v900 = vadd.f32 0.0, %v899
    %v901 = vpop.f32.mrb[0].mxu0
    %902 = vdwg.mxu0
    %903 = vst [vmem:[#allocation9] sm:$0xff] %v897
    %904 = vst [vmem:[#allocation9 + $0x8] sm:$0xff] %v900
    // Predicated region
    $region26: #{tpu_custom_call.1} parent=1 // pred_check
      _
    $region27: #{tpu_custom_call.1} parent=1 // pred_check_branch
      %906 = sbr.rel (0) target = $region29
    $region28: #{tpu_custom_call.1} parent=1 // pred_region
      %s908 = ssub.s32 256, 256
      %909 = vsyncadd [#allocation5], %s908
      %s910 = sshll.u32 [#allocation9], 4
      %s911 = int_to_ptr.vmem [resolvable:$true] %s910
      %916 = dma.vmem_to_hbm [thread:$0]  %s911, 256, %s3, [#allocation5], 128, 128, 8
    $region29: #{tpu_custom_call.1} parent=1 // pred_fallthru
      _
    // Predicated region
    $region30: #{tpu_custom_call.1} parent=1 // pred_check
      _
    $region31: #{tpu_custom_call.1} parent=1 // pred_check_branch
      %918 = sbr.rel (0) target = $region33
    $region32: #{tpu_custom_call.1} parent=1 // pred_region
      %919 = dma.done [#allocation5], 256
    $region33: #{tpu_custom_call.1} parent=1 // pred_fallthru
      _
    %920 = vsyncpa [#allocation4], 1
    %921 = vsyncpa [#allocation7], 1
    %922 = vsyncpa [#allocation5], 1

</llo_original>
